<compile_context>
chip_gen: v5e
topology: v5e:2x2
jax: 0.10.0
libtpu: 0.0.40
codegen_flags: <defaults>
</compile_context>

<pallas_src>
import jax
import jax.numpy as jnp
from jax import lax
from jax.experimental import pallas as pl
from jax.experimental.pallas import tpu as pltpu


# ---------------- Kernels ----------------

def _make_fused_kernel(seqlen, n_heads, head_dim, start_pos, update_kv_cache):
    """Fused kernel: xk = x @ W^T, KV-cache writeback, scores = q @ k^T (head-batched)."""

    def _xk(x_ref, w_ref):
        # (seqlen, n_heads, head_dim) -> (seqlen*n_heads, head_dim): layout no-op reshape
        # (head_dim stays the lane dim), so the linear is one MXU matmul.
        x2 = x_ref[...].reshape(seqlen * n_heads, head_dim)
        # x @ W^T without a transpose op: contract feature dim with W's in_features dim.
        xk2 = lax.dot_general(x2, w_ref[...], (((1,), (1,)), ((), ())),
                              preferred_element_type=jnp.float32)
        return xk2.reshape(seqlen, n_heads, head_dim)

    def _scores(xk, keys, scores_ref):
        # One head-batched matmul + one store, instead of 8 per-head slice/dot/stores.
        q_h = jnp.transpose(xk, (1, 0, 2))    # (n_heads, seqlen, head_dim)
        k_h = jnp.transpose(keys, (1, 0, 2))  # (n_heads, kvlen,  head_dim)
        scores_ref[...] = jnp.einsum("hqd,hkd->hqk", q_h, k_h,
                                     preferred_element_type=jnp.float32)

    def kernel_update(x_ref, w_ref, cache_in_ref, scores_ref, cache_out_ref):
        xk = _xk(x_ref, w_ref)
        # keys = old_keys[0:start_pos] ++ xk ; write the (kvlen, h, d) slab back into
        # the aliased cache block (old rows pass through unchanged).
        if start_pos > 0:
            keys = jnp.concatenate([cache_in_ref[0:start_pos], xk], axis=0)
        else:
            keys = xk
        cache_out_ref[...] = keys
        _scores(xk, keys, scores_ref)

    def kernel_no_update(x_ref, w_ref, cache_in_ref, scores_ref):
        xk = _xk(x_ref, w_ref)
        _scores(xk, cache_in_ref[...], scores_ref)   # un-updated cache rows [0:kvlen]

    return kernel_update if update_kv_cache else kernel_no_update


# ---------------- Wrapper ----------------

def model_forward(x, weight, cache_k, *, start_pos, update_kv_cache=True):
    """Equivalent of M.forward. `start_pos` / `update_kv_cache` are static.

    Returns (scores, cache_k_after).
      * update_kv_cache=True : cache_k is updated in place via input_output_aliases;
        callers should donate cache_k (jit donate_argnames) so only the (bsz, kvlen)
        slab moves through VMEM — without donation XLA inserts a defensive full copy
        (still correct, just slower).
      * update_kv_cache=False: the cache is returned unchanged; do NOT donate cache_k
        on this path (it is not aliased to any output).
    """
    bsz, seqlen, n_heads, head_dim = x.shape
    kvlen = start_pos + seqlen
    kernel = _make_fused_kernel(seqlen, n_heads, head_dim, start_pos, update_kv_cache)

    x_spec = pl.BlockSpec((None, seqlen, n_heads, head_dim), lambda b: (b, 0, 0, 0))
    w_spec = pl.BlockSpec(weight.shape, lambda b: (0, 0))
    cache_in_spec = pl.BlockSpec((None, kvlen, n_heads, head_dim),
                                 lambda b: (b, 0, 0, 0))
    scores_spec = pl.BlockSpec((None, n_heads, seqlen, kvlen), lambda b: (b, 0, 0, 0))
    scores_shape = jax.ShapeDtypeStruct((bsz, n_heads, seqlen, kvlen), jnp.float32)

    # Advisory cost so XLA schedules/overlaps this small custom call sensibly.
    flops = 2 * bsz * (seqlen * n_heads * head_dim * head_dim       # linear
                       + n_heads * seqlen * kvlen * head_dim)       # scores
    bytes_accessed = 4 * (x.size + weight.size
                          + 2 * bsz * kvlen * n_heads * head_dim    # cache slab r+w
                          + bsz * n_heads * seqlen * kvlen)         # scores out
    cost = pl.CostEstimate(flops=flops, transcendentals=0,
                           bytes_accessed=bytes_accessed)

    # grid=(bsz,) "parallel": the two v7x TensorCores each take one batch; on
    # single-TC v5e/v6e this is a 2-step serial loop (~0.35us extra) — acceptable.
    params = pltpu.CompilerParams(dimension_semantics=("parallel",))

    if update_kv_cache:
        cache_out_spec = pl.BlockSpec((None, kvlen, n_heads, head_dim),
                                      lambda b: (b, 0, 0, 0))
        scores, cache_out = pl.pallas_call(
            kernel,
            out_shape=(scores_shape,
                       jax.ShapeDtypeStruct(cache_k.shape, cache_k.dtype)),
            grid=(bsz,),
            in_specs=[x_spec, w_spec, cache_in_spec],
            out_specs=(scores_spec, cache_out_spec),
            input_output_aliases={2: 1},   # cache_k (input 2) -> cache out (output 1)
            compiler_params=params,
            cost_estimate=cost,
        )(x, weight, cache_k)
        return scores, cache_out
    else:
        scores = pl.pallas_call(
            kernel,
            out_shape=scores_shape,
            grid=(bsz,),
            in_specs=[x_spec, w_spec, cache_in_spec],
            out_specs=scores_spec,
            compiler_params=params,
            cost_estimate=cost,
        )(x, weight, cache_k)
        return scores, cache_k


# ---------------- Main ----------------

if __name__ == "__main__":
    key = jax.random.PRNGKey(0)
    k_w, k_x, k_c = jax.random.split(key, 3)

    # Module-implied shapes: n_heads=8, head_dim=64 fixed by cache_k=(32,384,8,64)
    # and Linear(64, 64). Small instance for the test.
    bsz, seqlen, n_heads, head_dim = 2, 8, 8, 64
    max_bs, max_seq = 32, 384
    start_pos = 4
    kvlen = start_pos + seqlen

    weight = jax.random.normal(k_w, (64, 64), dtype=jnp.float32) * 0.05
    x = jax.random.normal(k_x, (bsz, seqlen, n_heads, head_dim), dtype=jnp.float32)

    # Cache starts as zeros in the module; add prior content so keys[:start_pos]
    # is non-trivial.
    cache_k = jnp.zeros((max_bs, max_seq, n_heads, head_dim), dtype=jnp.float32)
    prior = jax.random.normal(k_c, (bsz, start_pos, n_heads, head_dim),
                              dtype=jnp.float32)
    cache_k = jax.lax.dynamic_update_slice(cache_k, prior, (0, 0, 0, 0))

    # Pure-JAX reference — computed BEFORE the Pallas call because cache_k is donated.
    xk_ref = jnp.einsum("bshd,od->bsho", x, weight)
    cache_ref = jax.lax.dynamic_update_slice(cache_k, xk_ref, (0, start_pos, 0, 0))
    keys_ref = cache_ref[:bsz, :kvlen]
    scores_ref = jnp.einsum("bqhd,bkhd->bhqk", xk_ref, keys_ref)
    cache_ref, scores_ref = jax.block_until_ready((cache_ref, scores_ref))

    fwd = jax.jit(model_forward,
                  static_argnames=("start_pos", "update_kv_cache"),
                  donate_argnames=("cache_k",))
    scores, new_cache = fwd(x, weight, cache_k, start_pos=start_pos)
    scores, new_cache = jax.block_until_ready((scores, new_cache))

    assert scores.shape == (bsz, n_heads, seqlen, kvlen)
    assert jnp.allclose(scores, scores_ref, atol=1e-4, rtol=1e-4)
    assert jnp.allclose(new_cache, cache_ref, atol=1e-5, rtol=1e-5)

    print("KERNEL_OK")
</pallas_src>

<mosaic_0001>
module attributes {stable_mosaic.version = 11 : i64} {
  func.func @kernel_update(%arg0: i32, %arg1: memref<1x8x8x64xf32, #tpu.memory_space<vmem>>, %arg2: memref<64x64xf32, #tpu.memory_space<vmem>>, %arg3: memref<1x12x8x64xf32, #tpu.memory_space<vmem>>, %arg4: memref<1x8x8x12xf32, #tpu.memory_space<vmem>>, %arg5: memref<1x12x8x64xf32, #tpu.memory_space<vmem>>) attributes {dimension_semantics = [#tpu.dimension_semantics<parallel>], iteration_bounds = array<i64: 2>, scalar_prefetch = 0 : i64, scratch_operands = 0 : i64, tpu.core_type = #tpu.core_type<tc>, window_params = [{transform_indices = @transform_0, window_bounds = array<i64: 1, 8, 8, 64>}, {pipeline_mode = #tpu.pipeline_mode<synchronous>, transform_indices = @transform_1, window_bounds = array<i64: 64, 64>}, {transform_indices = @transform_2, window_bounds = array<i64: 1, 12, 8, 64>}, {transform_indices = @transform_3, window_bounds = array<i64: 1, 8, 8, 12>}, {transform_indices = @transform_4, window_bounds = array<i64: 1, 12, 8, 64>}]} {
    %c0 = arith.constant 0 : index
    %c0_0 = arith.constant 0 : index
    %c0_1 = arith.constant 0 : index
    %c0_2 = arith.constant 0 : index
    %0 = vector.load %arg1[%c0, %c0_0, %c0_1, %c0_2] : memref<1x8x8x64xf32, #tpu.memory_space<vmem>>, vector<1x8x8x64xf32>
    %1 = vector.shape_cast %0 : vector<1x8x8x64xf32> to vector<8x8x64xf32>
    %2 = vector.shape_cast %1 : vector<8x8x64xf32> to vector<64x64xf32>
    %c0_3 = arith.constant 0 : index
    %c0_4 = arith.constant 0 : index
    %3 = vector.load %arg2[%c0_3, %c0_4] : memref<64x64xf32, #tpu.memory_space<vmem>>, vector<64x64xf32>
    %cst = arith.constant dense<0.000000e+00> : vector<64x64xf32>
    %4 = tpu.matmul %2, %3, %cst {dimension_numbers = #tpu.dot_dimension_numbers<[1], [1], [0], [0], [0, 0, 1, 0], [], []>} : vector<64x64xf32>, vector<64x64xf32>, vector<64x64xf32> -> vector<64x64xf32>
    %5 = vector.shape_cast %4 : vector<64x64xf32> to vector<8x8x64xf32>
    %c0_5 = arith.constant 0 : index
    %c0_6 = arith.constant 0 : index
    %c0_7 = arith.constant 0 : index
    %c0_8 = arith.constant 0 : index
    %6 = vector.load %arg3[%c0_5, %c0_6, %c0_7, %c0_8] : memref<1x12x8x64xf32, #tpu.memory_space<vmem>>, vector<1x4x8x64xf32>
    %7 = vector.shape_cast %6 : vector<1x4x8x64xf32> to vector<4x8x64xf32>
    %8 = tpu.concatenate %7, %5 in 0 : vector<4x8x64xf32>, vector<8x8x64xf32> -> vector<12x8x64xf32>
    %c0_9 = arith.constant 0 : index
    %c0_10 = arith.constant 0 : index
    %c0_11 = arith.constant 0 : index
    %c0_12 = arith.constant 0 : index
    %9 = vector.load %arg5[%c0_9, %c0_10, %c0_11, %c0_12] : memref<1x12x8x64xf32, #tpu.memory_space<vmem>>, vector<1x12x8x64xf32>
    %10 = vector.shape_cast %9 : vector<1x12x8x64xf32> to vector<12x8x64xf32>
    %11 = vector.shape_cast %8 : vector<12x8x64xf32> to vector<1x12x8x64xf32>
    tpu.vector_store %arg5[%c0_9, %c0_10, %c0_11, %c0_12], %11 {strides = array<i32>} : memref<1x12x8x64xf32, #tpu.memory_space<vmem>>, vector<1x12x8x64xf32>,
    %12 = tpu.transpose %5, [1, 0, 2] : vector<8x8x64xf32> -> vector<8x8x64xf32>
    %13 = tpu.transpose %8, [1, 0, 2] : vector<12x8x64xf32> -> vector<8x12x64xf32>
    "tpu.trace_start"() <{level = 10 : i32, message = "hqd,hkd->hqk"}> : () -> ()
    %cst_13 = arith.constant dense<0.000000e+00> : vector<8x8x12xf32>
    %14 = tpu.matmul %12, %13, %cst_13 {dimension_numbers = #tpu.dot_dimension_numbers<[2], [2], [1], [1], [0, 0, 0, 1, 1, 1], [0], [0]>} : vector<8x8x64xf32>, vector<8x12x64xf32>, vector<8x8x12xf32> -> vector<8x8x12xf32>
    "tpu.trace_stop"() : () -> ()
    %c0_14 = arith.constant 0 : index
    %c0_15 = arith.constant 0 : index
    %c0_16 = arith.constant 0 : index
    %c0_17 = arith.constant 0 : index
    %15 = vector.load %arg4[%c0_14, %c0_15, %c0_16, %c0_17] : memref<1x8x8x12xf32, #tpu.memory_space<vmem>>, vector<1x8x8x12xf32>
    %16 = vector.shape_cast %15 : vector<1x8x8x12xf32> to vector<8x8x12xf32>
    %17 = vector.shape_cast %14 : vector<8x8x12xf32> to vector<1x8x8x12xf32>
    tpu.vector_store %arg4[%c0_14, %c0_15, %c0_16, %c0_17], %17 {strides = array<i32>} : memref<1x8x8x12xf32, #tpu.memory_space<vmem>>, vector<1x8x8x12xf32>,
    return
  }
  func.func @transform_0(%arg0: i32) -> (i32, i32, i32, i32) {
    %c0_i32 = arith.constant 0 : i32
    %c0_i32_0 = arith.constant 0 : i32
    %c0_i32_1 = arith.constant 0 : i32
    %c0_i32_2 = arith.constant 0 : i32
    return %arg0, %c0_i32, %c0_i32_0, %c0_i32_1 : i32, i32, i32, i32
  }
  func.func @transform_1(%arg0: i32) -> (i32, i32) {
    %c0_i32 = arith.constant 0 : i32
    %c0_i32_0 = arith.constant 0 : i32
    %c0_i32_1 = arith.constant 0 : i32
    return %c0_i32, %c0_i32_0 : i32, i32
  }
  func.func @transform_2(%arg0: i32) -> (i32, i32, i32, i32) {
    %c0_i32 = arith.constant 0 : i32
    %c0_i32_0 = arith.constant 0 : i32
    %c0_i32_1 = arith.constant 0 : i32
    %c0_i32_2 = arith.constant 0 : i32
    return %arg0, %c0_i32, %c0_i32_0, %c0_i32_1 : i32, i32, i32, i32
  }
  func.func @transform_3(%arg0: i32) -> (i32, i32, i32, i32) {
    %c0_i32 = arith.constant 0 : i32
    %c0_i32_0 = arith.constant 0 : i32
    %c0_i32_1 = arith.constant 0 : i32
    %c0_i32_2 = arith.constant 0 : i32
    return %arg0, %c0_i32, %c0_i32_0, %c0_i32_1 : i32, i32, i32, i32
  }
  func.func @transform_4(%arg0: i32) -> (i32, i32, i32, i32) {
    %c0_i32 = arith.constant 0 : i32
    %c0_i32_0 = arith.constant 0 : i32
    %c0_i32_1 = arith.constant 0 : i32
    %c0_i32_2 = arith.constant 0 : i32
    return %arg0, %c0_i32, %c0_i32_0, %c0_i32_1 : i32, i32, i32, i32
  }
}

</mosaic_0001>

<llo_original>
// kernel: model_forward.1
$region0: #{model_forward.1}
  #allocation0 [shape = 'u32[]', space=smem, size = 0x4, offset = 0x4, fixed_abs, tag = 'smem constant byte address 0x4 - core index']
  #allocation1 [shape = 'u32[72,128]{1,0:T(1,128)}', space=vmem, size = 0x9000, scoped, tag = 'internal scratch']
  %s0 = inlined_call_operand.vmem [shape: f32[2,8,8,64], index: 0, kind: input, shape index: {}]
  %s1 = inlined_call_operand.vmem [shape: f32[64,64], index: 1, kind: input, shape index: {}]
  %s2 = inlined_call_operand.vmem [shape: f32[32,384,8,64], index: 2, kind: input, shape index: {}, may-alias: {2,4}]
  %s3 = inlined_call_operand.hbm [shape: f32[2,8,8,12], index: 3, kind: output, shape index: {0}]
  %s4 = inlined_call_operand.vmem [shape: f32[32,384,8,64], index: 4, kind: output, shape index: {1}, may-alias: {2,4}]
  %5 = xla_tuple %s3, %s4
  %s6 = sld [smem:[#allocation0]]
  $region53: #{model_forward.1} parent=0
    _
  %s8 = ssub.s32 1, %s6
  %s9 = scalar_select 0, %s8, %s6
  $region1: #{model_forward.1} parent=0
    #allocation2 [shape = 'u8[65536]{0}', space=vmem, size = 0x10000, scoped, tag = 'output window, operand 0']
    #allocation3 [shape = 's32[2]{0}', space=sflag, size = 0x8, scoped, tag = 'scoped memory for model_forward.1']
    %10 = vsyncpa [#allocation3], 0
    %s11 = scalar_lea.sflag [#allocation3], 1
    %12 = vsyncpa %s11, 0
    loop: start=0, step=1, limit=4
    $region2: #{model_forward.1} parent=1 // loop_pre_header
      _
    $region3: #{model_forward.1} parent=1 // loop_header
      %s14 = sphi 0, %s18
      %p15 = scmp.ge.s32.totalorder %s14, 4
      %s24 = sphi 0, %s26
      %s27 = sphi 0, %s24
      %s28 = sphi 0, %s27
      %s44 = sphi 0, %s28
      %s48 = sphi 0, %s48
      %s50 = sphi 0, %s48
      %s51 = sphi 0, %s50
      %s65 = sphi 0, %s51
      %s71 = sphi 0, %s73
      %s74 = sphi 0, %s71
      %s75 = sphi 0, %s74
      %s91 = sphi 0, %s75
      %s97 = sphi 0, %s99
      %s100 = sphi 0, %s97
      %s101 = sphi 0, %s100
      %s117 = sphi 0, %s101
      %s123 = sphi 0, %s125
      %s126 = sphi 0, %s123
      %s127 = sphi 0, %s126
      %s143 = sphi 0, %s127
    $region4: #{model_forward.1} parent=1 // loop_header_branch
      %17 = sbr.rel (%p15) target = $region8
    $region5: #{model_forward.1} parent=1 // loop_body
      %s19 = ssub.s32 %s14, 1
      %s20 = ssub.s32 %s14, 2
      %s21 = sadd.s32 %s14, 1
      %s22 = ssub.s32 %s14, %s21
      %p23 = scmp.eq.s32.totalorder %s22, 0
      %s25 = sadd.s32 %s24, 1
      %s26 = scalar_select %p23, %s24, %s25
      %p29 = pneg %p23
      %p30 = scmp.eq.s32.totalorder %s14, 1
      %p31 = por %p29, %p30
      %p32 = scmp.ne.s32.totalorder %s24, %s27
      %p33 = scmp.eq.s32.totalorder %s14, 0
      %p34 = por %p32, %p33
      %p35 = scmp.ne.s32.totalorder %s24, %s27
      %p36 = scmp.eq.s32.totalorder %s19, 1
      %p37 = por %p35, %p36
      %p38 = scmp.ne.s32.totalorder %s27, %s28
      %p39 = scmp.eq.s32.totalorder %s19, 0
      %p40 = por %p38, %p39
      %p41 = scmp.ne.s32.totalorder %s27, %s28
      %p42 = scmp.eq.s32.totalorder %s20, 1
      %p43 = por %p41, %p42
      %p45 = scmp.ne.s32.totalorder %s28, %s44
      %p46 = scmp.eq.s32.totalorder %s20, 0
      %p47 = por %p45, %p46
      %s49 = sadd.s32 %s48, 1
      %p52 = scmp.eq.s32.totalorder %s14, 1
      %p53 = scmp.ne.s32.totalorder %s48, %s50
      %p54 = scmp.eq.s32.totalorder %s14, 0
      %p55 = por %p53, %p54
      %p56 = scmp.ne.s32.totalorder %s48, %s50
      %p57 = scmp.eq.s32.totalorder %s19, 1
      %p58 = por %p56, %p57
      %p59 = scmp.ne.s32.totalorder %s50, %s51
      %p60 = scmp.eq.s32.totalorder %s19, 0
      %p61 = por %p59, %p60
      %p62 = scmp.ne.s32.totalorder %s50, %s51
      %p63 = scmp.eq.s32.totalorder %s20, 1
      %p64 = por %p62, %p63
      %p66 = scmp.ne.s32.totalorder %s51, %s65
      %p67 = scmp.eq.s32.totalorder %s20, 0
      %p68 = por %p66, %p67
      %s69 = ssub.s32 %s14, %s21
      %p70 = scmp.eq.s32.totalorder %s69, 0
      %s72 = sadd.s32 %s71, 1
      %s73 = scalar_select %p70, %s71, %s72
      %p76 = pneg %p70
      %p77 = scmp.eq.s32.totalorder %s14, 1
      %p78 = por %p76, %p77
      %p79 = scmp.ne.s32.totalorder %s71, %s74
      %p80 = scmp.eq.s32.totalorder %s14, 0
      %p81 = por %p79, %p80
      %p82 = scmp.ne.s32.totalorder %s71, %s74
      %p83 = scmp.eq.s32.totalorder %s19, 1
      %p84 = por %p82, %p83
      %p85 = scmp.ne.s32.totalorder %s74, %s75
      %p86 = scmp.eq.s32.totalorder %s19, 0
      %p87 = por %p85, %p86
      %p88 = scmp.ne.s32.totalorder %s74, %s75
      %p89 = scmp.eq.s32.totalorder %s20, 1
      %p90 = por %p88, %p89
      %p92 = scmp.ne.s32.totalorder %s75, %s91
      %p93 = scmp.eq.s32.totalorder %s20, 0
      %p94 = por %p92, %p93
      %s95 = ssub.s32 %s14, %s21
      %p96 = scmp.eq.s32.totalorder %s95, 0
      %s98 = sadd.s32 %s97, 1
      %s99 = scalar_select %p96, %s97, %s98
      %p102 = pneg %p96
      %p103 = scmp.eq.s32.totalorder %s14, 1
      %p104 = por %p102, %p103
      %p105 = scmp.ne.s32.totalorder %s97, %s100
      %p106 = scmp.eq.s32.totalorder %s14, 0
      %p107 = por %p105, %p106
      %p108 = scmp.ne.s32.totalorder %s97, %s100
      %p109 = scmp.eq.s32.totalorder %s19, 1
      %p110 = por %p108, %p109
      %p111 = scmp.ne.s32.totalorder %s100, %s101
      %p112 = scmp.eq.s32.totalorder %s19, 0
      %p113 = por %p111, %p112
      %p114 = scmp.ne.s32.totalorder %s100, %s101
      %p115 = scmp.eq.s32.totalorder %s20, 1
      %p116 = por %p114, %p115
      %p118 = scmp.ne.s32.totalorder %s101, %s117
      %p119 = scmp.eq.s32.totalorder %s20, 0
      %p120 = por %p118, %p119
      %s121 = ssub.s32 %s14, %s21
      %p122 = scmp.eq.s32.totalorder %s121, 0
      %s124 = sadd.s32 %s123, 1
      %s125 = scalar_select %p122, %s123, %s124
      %p128 = pneg %p122
      %p129 = scmp.eq.s32.totalorder %s14, 1
      %p130 = por %p128, %p129
      %p131 = scmp.ne.s32.totalorder %s123, %s126
      %p132 = scmp.eq.s32.totalorder %s14, 0
      %p133 = por %p131, %p132
      %p134 = scmp.ne.s32.totalorder %s123, %s126
      %p135 = scmp.eq.s32.totalorder %s19, 1
      %p136 = por %p134, %p135
      %p137 = scmp.ne.s32.totalorder %s126, %s127
      %p138 = scmp.eq.s32.totalorder %s19, 0
      %p139 = por %p137, %p138
      %p140 = scmp.ne.s32.totalorder %s126, %s127
      %p141 = scmp.eq.s32.totalorder %s20, 1
      %p142 = por %p140, %p141
      %p144 = scmp.ne.s32.totalorder %s127, %s143
      %p145 = scmp.eq.s32.totalorder %s20, 0
      %p146 = por %p144, %p145
      %p147 = scmp.le.s32.totalorder 1, %s14
      %p148 = scmp.lt.s32.totalorder %s14, 3
      %p149 = pnand %p147, %p148
      %p150 = pneg %p149
      // Predicated region
      $region9: #{model_forward.1} parent=5 // pred_check
        _
      $region10: #{model_forward.1} parent=5 // pred_check_branch
        %152 = sbr.rel (%p149) target = $region12
      $region11: #{model_forward.1} parent=5 // pred_region
        %s153 = ssub.s32 %s14, 1
        // Predicated region
        $region13: #{model_forward.1} parent=11 // pred_check
          %p154 = pneg %p61
        $region14: #{model_forward.1} parent=11 // pred_check_branch
          %156 = sbr.rel (%p154) target = $region16
        $region15: #{model_forward.1} parent=11 // pred_region
          _
        $region16: #{model_forward.1} parent=11 // pred_fallthru
          _
      $region12: #{model_forward.1} parent=5 // pred_fallthru
        _
      %p157 = scmp.lt.s32.totalorder %s14, 2
      // Predicated region
      $region17: #{model_forward.1} parent=5 // pred_check
        %p158 = pneg %p157
      $region18: #{model_forward.1} parent=5 // pred_check_branch
        %160 = sbr.rel (%p158) target = $region20
      $region19: #{model_forward.1} parent=5 // pred_region
        // Predicated region
        $region21: #{model_forward.1} parent=19 // pred_check
          %p161 = pneg %p34
        $region22: #{model_forward.1} parent=19 // pred_check_branch
          %163 = sbr.rel (%p161) target = $region24
        $region23: #{model_forward.1} parent=19 // pred_region
          %p164 = scmp.lt.s32.totalorder %s14, 1
          %s165 = scalar_select %p164, %s14, 1
          %s166 = smul.addr %s165, 8
          %s167 = smul.addr %s166, 8
          %s168 = scalar_lea.vmem %s0, %s167
        $region24: #{model_forward.1} parent=19 // pred_fallthru
          _
        // Predicated region
        $region25: #{model_forward.1} parent=19 // pred_check
          %p169 = pneg %p81
        $region26: #{model_forward.1} parent=19 // pred_check_branch
          %171 = sbr.rel (%p169) target = $region28
        $region27: #{model_forward.1} parent=19 // pred_region
          %p172 = scmp.lt.s32.totalorder %s14, 31
          %s173 = scalar_select %p172, %s14, 31
          %s174 = smul.addr %s173, 384
          %s175 = smul.addr %s174, 8
          %s176 = scalar_lea.vmem %s2, %s175
        $region28: #{model_forward.1} parent=19 // pred_fallthru
          _
      $region20: #{model_forward.1} parent=5 // pred_fallthru
        _
      %p177 = scmp.le.s32.totalorder 1, %s14
      %p178 = scmp.lt.s32.totalorder %s14, 3
      %p179 = pnand %p177, %p178
      %p180 = pneg %p179
      // Predicated region
      $region29: #{model_forward.1} parent=5 // pred_check
        _
      $region30: #{model_forward.1} parent=5 // pred_check_branch
        %182 = sbr.rel (%p179) target = $region32
      $region31: #{model_forward.1} parent=5 // pred_region
        %s183 = ssub.s32 %s14, 1
        %p184 = scmp.lt.s32.totalorder %s19, 1
        %s185 = scalar_select %p184, %s19, 1
        %s186 = smul.addr %s185, 8
        %s187 = smul.addr %s186, 8
        %s188 = scalar_lea.vmem %s0, %s187
        %p189 = pneg %p40
        %p190 = pneg %p37
        %p191 = pneg %p61
        %p192 = pneg %p58
        %p193 = scmp.lt.s32.totalorder %s19, 31
        %s194 = scalar_select %p193, %s19, 31
        %s195 = smul.addr %s194, 384
        %s196 = smul.addr %s195, 8
        %s197 = scalar_lea.vmem %s2, %s196
        %p198 = pneg %p87
        %p199 = pneg %p84
        %p200 = pneg %p113
        %p201 = pneg %p110
        %s202 = sand.u32 %s100, 1
        %s203 = scalar_lea.sflag [#allocation3], %s202
        %s204 = sand.u32 %s100, 1
        %s205 = smul.addr %s204, 64
        %s206 = scalar_lea.vmem [#allocation2], %s205
        %p207 = pneg %p139
        %p208 = pneg %p136
        %p209 = scmp.lt.s32.totalorder %s19, 31
        %s210 = scalar_select %p209, %s19, 31
        %s211 = smul.addr %s210, 384
        %s212 = smul.addr %s211, 8
        %s213 = scalar_lea.vmem %s4, %s212
        %p214 = scmp.lt.s32.totalorder %s19, 1
        %s215 = scalar_select %p214, %s19, 1
        %s216 = smul.addr %s215, 8
        %s217 = smul.addr %s216, 8
        %s218 = scalar_lea.vmem %s0, %s217
        %p219 = scmp.lt.s32.totalorder %s19, 31
        %s220 = scalar_select %p219, %s19, 31
        %s221 = smul.addr %s220, 384
        %s222 = smul.addr %s221, 8
        %s223 = scalar_lea.vmem %s2, %s222
        %p224 = scmp.lt.s32.totalorder %s19, 31
        %s225 = scalar_select %p224, %s19, 31
        %s226 = smul.addr %s225, 384
        %s227 = smul.addr %s226, 8
        %s228 = scalar_lea.vmem %s4, %s227
        %v229 = vld [vmem:[%s218] sm:$0xff]
        %v230 = vld [vmem:[%s218 + $0x8] sm:$0xff]
        %v231 = vld [vmem:[%s218 + $0x10] sm:$0xff]
        %v232 = vld [vmem:[%s218 + $0x18] sm:$0xff]
        %v233 = vld [vmem:[%s218 + $0x20] sm:$0xff]
        %v234 = vld [vmem:[%s218 + $0x28] sm:$0xff]
        %v235 = vld [vmem:[%s218 + $0x30] sm:$0xff]
        %v236 = vld [vmem:[%s218 + $0x38] sm:$0xff]
        %v237 = vld [vmem:[%s1] sm:$0xff]
        %v238 = vld [vmem:[%s1 + $0x8] sm:$0xff]
        %v239 = vld [vmem:[%s1 + $0x10] sm:$0xff]
        %v240 = vld [vmem:[%s1 + $0x18] sm:$0xff]
        %v241 = vld [vmem:[%s1 + $0x20] sm:$0xff]
        %v242 = vld [vmem:[%s1 + $0x28] sm:$0xff]
        %v243 = vld [vmem:[%s1 + $0x30] sm:$0xff]
        %v244 = vld [vmem:[%s1 + $0x38] sm:$0xff]
        %vm245 = vcmask 523264
        %v247 = vsel %vm245, %v229, 0
        %v250 = vsel %vm245, %v230, 0
        %v253 = vsel %vm245, %v231, 0
        %v256 = vsel %vm245, %v232, 0
        %v259 = vsel %vm245, %v233, 0
        %v262 = vsel %vm245, %v234, 0
        %v265 = vsel %vm245, %v235, 0
        %v268 = vsel %vm245, %v236, 0
        %v271 = vsel %vm245, %v237, 0
        %v274 = vsel %vm245, %v238, 0
        %v277 = vsel %vm245, %v239, 0
        %v280 = vsel %vm245, %v240, 0
        %v283 = vsel %vm245, %v241, 0
        %v286 = vsel %vm245, %v242, 0
        %v289 = vsel %vm245, %v243, 0
        %v292 = vsel %vm245, %v244, 0
        %294 = vmatpush.xpose.msra.mxu0 0.0
        %295 = vmatpush.xpose.msra.mxu0 0.0
        %296 = vmatpush.xpose.msra.mxu0 0.0
        %297 = vmatpush.xpose.msra.mxu0 0.0
        %298 = vmatpush.xpose.msra.mxu0 0.0
        %299 = vmatpush.xpose.msra.mxu0 0.0
        %300 = vmatpush.xpose.msra.mxu0 0.0
        %301 = vmatpush.xpose.msra.mxu0 0.0
        %302 = vmatpush.xpose.msra.mxu0 %v292
        %303 = vmatpush.xpose.msra.mxu0 %v289
        %304 = vmatpush.xpose.msra.mxu0 %v286
        %305 = vmatpush.xpose.msra.mxu0 %v283
        %306 = vmatpush.xpose.msra.mxu0 %v280
        %307 = vmatpush.xpose.msra.mxu0 %v277
        %308 = vmatpush.xpose.msra.mxu0 %v274
        %309 = vmatpush.xpose.msra.mxu0 %v271
        %310 = vmatmul.f32.gmra.mxu0 %v247
        %v311 = vpop.f32.mrf.mxu0
        %v312 = vadd.f32 0.0, %v311
        %313 = vmatmul.f32.gmra.mxu0 %v250
        %v314 = vpop.f32.mrf.mxu0
        %v315 = vadd.f32 0.0, %v314
        %316 = vmatmul.f32.gmra.mxu0 %v253
        %v317 = vpop.f32.mrf.mxu0
        %v318 = vadd.f32 0.0, %v317
        %319 = vmatmul.f32.gmra.mxu0 %v256
        %v320 = vpop.f32.mrf.mxu0
        %v321 = vadd.f32 0.0, %v320
        %322 = vmatmul.f32.gmra.mxu0 %v259
        %v323 = vpop.f32.mrf.mxu0
        %v324 = vadd.f32 0.0, %v323
        %325 = vmatmul.f32.gmra.mxu0 %v262
        %v326 = vpop.f32.mrf.mxu0
        %v327 = vadd.f32 0.0, %v326
        %328 = vmatmul.f32.gmra.mxu0 %v265
        %v329 = vpop.f32.mrf.mxu0
        %v330 = vadd.f32 0.0, %v329
        %331 = vmatmul.f32.gmra.mxu0 %v268
        %v332 = vpop.f32.mrf.mxu0
        %v333 = vadd.f32 0.0, %v332
        %334 = vdwg.mxu0
        %v335 = vld [vmem:[%s223] sm:$0xff]
        %v336 = vld [vmem:[%s223 + $0x8] sm:$0xff]
        %v337 = vld [vmem:[%s223 + $0x10] sm:$0xff]
        %v338 = vld [vmem:[%s223 + $0x18] sm:$0xff]
        %339 = vst.msk [vmem:[%s228] sm:$0xff] %vm245, %v335
        %340 = vst.msk [vmem:[%s228 + $0x8] sm:$0xff] %vm245, %v336
        %341 = vst.msk [vmem:[%s228 + $0x10] sm:$0xff] %vm245, %v337
        %342 = vst.msk [vmem:[%s228 + $0x18] sm:$0xff] %vm245, %v338
        %343 = vst.msk [vmem:[%s228 + $0x20] sm:$0xff] %vm245, %v312
        %344 = vst.msk [vmem:[%s228 + $0x28] sm:$0xff] %vm245, %v315
        %345 = vst.msk [vmem:[%s228 + $0x30] sm:$0xff] %vm245, %v318
        %346 = vst.msk [vmem:[%s228 + $0x38] sm:$0xff] %vm245, %v321
        %347 = vst.msk [vmem:[%s228 + $0x40] sm:$0xff] %vm245, %v324
        %348 = vst.msk [vmem:[%s228 + $0x48] sm:$0xff] %vm245, %v327
        %349 = vst.msk [vmem:[%s228 + $0x50] sm:$0xff] %vm245, %v330
        %350 = vst.msk [vmem:[%s228 + $0x58] sm:$0xff] %vm245, %v333
        %v351 = vrot.slane %v318, 4
        %vm352 = vcmask 1047556
        %v353 = vsel %vm352, %v351, %v312
        %v354 = vrot.slane %v312, 4
        %v355 = vsel %vm352, %v318, %v354
        %v357 = vunpack.c.l.s4 1983009808
        %v358 = vunpack.c.0.s8 %v357
        %v359 = vperm.slane %v353, %v358
        %v361 = vunpack.c.l.s4 1983009808
        %v362 = vunpack.c.0.s8 %v361
        %v363 = vperm.slane %v355, %v362
        %v364 = vrot.slane %v321, 4
        %v365 = vsel %vm352, %v364, %v315
        %v366 = vrot.slane %v315, 4
        %v367 = vsel %vm352, %v321, %v366
        %v369 = vunpack.c.l.s4 1983009808
        %v370 = vunpack.c.0.s8 %v369
        %v371 = vperm.slane %v365, %v370
        %v373 = vunpack.c.l.s4 1983009808
        %v374 = vunpack.c.0.s8 %v373
        %v375 = vperm.slane %v367, %v374
        %v376 = vrot.slane %v330, 4
        %v377 = vsel %vm352, %v376, %v324
        %v378 = vrot.slane %v324, 4
        %v379 = vsel %vm352, %v330, %v378
        %v381 = vunpack.c.l.s4 1983009808
        %v382 = vunpack.c.0.s8 %v381
        %v383 = vperm.slane %v377, %v382
        %v385 = vunpack.c.l.s4 1983009808
        %v386 = vunpack.c.0.s8 %v385
        %v387 = vperm.slane %v379, %v386
        %v388 = vrot.slane %v333, 4
        %v389 = vsel %vm352, %v388, %v327
        %v390 = vrot.slane %v327, 4
        %v391 = vsel %vm352, %v333, %v390
        %v393 = vunpack.c.l.s4 1983009808
        %v394 = vunpack.c.0.s8 %v393
        %v395 = vperm.slane %v389, %v394
        %v397 = vunpack.c.l.s4 1983009808
        %v398 = vunpack.c.0.s8 %v397
        %v399 = vperm.slane %v391, %v398
        %v400 = vrot.slane %v371, 4
        %v401 = vsel %vm352, %v400, %v359
        %v402 = vrot.slane %v359, 4
        %v403 = vsel %vm352, %v371, %v402
        %v405 = vunpack.c.l.s4 1934713408
        %v406 = vunpack.c.0.s8 %v405
        %v407 = vperm.slane %v401, %v406
        %v409 = vunpack.c.l.s4 1934713408
        %v410 = vunpack.c.0.s8 %v409
        %v411 = vperm.slane %v403, %v410
        %v412 = vrot.slane %v375, 4
        %v413 = vsel %vm352, %v412, %v363
        %v414 = vrot.slane %v363, 4
        %v415 = vsel %vm352, %v375, %v414
        %v417 = vunpack.c.l.s4 1934713408
        %v418 = vunpack.c.0.s8 %v417
        %v419 = vperm.slane %v413, %v418
        %v421 = vunpack.c.l.s4 1934713408
        %v422 = vunpack.c.0.s8 %v421
        %v423 = vperm.slane %v415, %v422
        %v424 = vrot.slane %v395, 4
        %v425 = vsel %vm352, %v424, %v383
        %v426 = vrot.slane %v383, 4
        %v427 = vsel %vm352, %v395, %v426
        %v429 = vunpack.c.l.s4 1934713408
        %v430 = vunpack.c.0.s8 %v429
        %v431 = vperm.slane %v425, %v430
        %v433 = vunpack.c.l.s4 1934713408
        %v434 = vunpack.c.0.s8 %v433
        %v435 = vperm.slane %v427, %v434
        %v436 = vrot.slane %v399, 4
        %v437 = vsel %vm352, %v436, %v387
        %v438 = vrot.slane %v387, 4
        %v439 = vsel %vm352, %v399, %v438
        %v441 = vunpack.c.l.s4 1934713408
        %v442 = vunpack.c.0.s8 %v441
        %v443 = vperm.slane %v437, %v442
        %v445 = vunpack.c.l.s4 1934713408
        %v446 = vunpack.c.0.s8 %v445
        %v447 = vperm.slane %v439, %v446
        %v448 = vrot.slane %v431, 4
        %v449 = vsel %vm352, %v448, %v407
        %v450 = vrot.slane %v407, 4
        %v451 = vsel %vm352, %v431, %v450
        %v452 = vrot.slane %v435, 4
        %v453 = vsel %vm352, %v452, %v411
        %v454 = vrot.slane %v411, 4
        %v455 = vsel %vm352, %v435, %v454
        %v456 = vrot.slane %v443, 4
        %v457 = vsel %vm352, %v456, %v419
        %v458 = vrot.slane %v419, 4
        %v459 = vsel %vm352, %v443, %v458
        %v460 = vrot.slane %v447, 4
        %v461 = vsel %vm352, %v460, %v423
        %v462 = vrot.slane %v423, 4
        %v463 = vsel %vm352, %v447, %v462
        %v464 = vrot.slane %v337, 4
        %v465 = vsel %vm352, %v464, %v335
        %v466 = vrot.slane %v335, 4
        %v467 = vsel %vm352, %v337, %v466
        %v469 = vunpack.c.l.s4 1983009808
        %v470 = vunpack.c.0.s8 %v469
        %v471 = vperm.slane %v465, %v470
        %v473 = vunpack.c.l.s4 1983009808
        %v474 = vunpack.c.0.s8 %v473
        %v475 = vperm.slane %v467, %v474
        %v476 = vrot.slane %v338, 4
        %v477 = vsel %vm352, %v476, %v336
        %v478 = vrot.slane %v336, 4
        %v479 = vsel %vm352, %v338, %v478
        %v481 = vunpack.c.l.s4 1983009808
        %v482 = vunpack.c.0.s8 %v481
        %v483 = vperm.slane %v477, %v482
        %v485 = vunpack.c.l.s4 1983009808
        %v486 = vunpack.c.0.s8 %v485
        %v487 = vperm.slane %v479, %v486
        %v488 = vrot.slane %v483, 4
        %v489 = vsel %vm352, %v488, %v471
        %v490 = vrot.slane %v471, 4
        %v491 = vsel %vm352, %v483, %v490
        %v493 = vunpack.c.l.s4 1934713408
        %v494 = vunpack.c.0.s8 %v493
        %v495 = vperm.slane %v489, %v494
        %v497 = vunpack.c.l.s4 1934713408
        %v498 = vunpack.c.0.s8 %v497
        %v499 = vperm.slane %v491, %v498
        %v500 = vrot.slane %v487, 4
        %v501 = vsel %vm352, %v500, %v475
        %v502 = vrot.slane %v475, 4
        %v503 = vsel %vm352, %v487, %v502
        %v505 = vunpack.c.l.s4 1934713408
        %v506 = vunpack.c.0.s8 %v505
        %v507 = vperm.slane %v501, %v506
        %v509 = vunpack.c.l.s4 1934713408
        %v510 = vunpack.c.0.s8 %v509
        %v511 = vperm.slane %v503, %v510
        %v512 = vsel %vm352, %v450, %v495
        %v513 = vrot.slane %v495, 4
        %v514 = vsel %vm352, %v407, %v513
        %v515 = vsel %vm352, %v454, %v499
        %v516 = vrot.slane %v499, 4
        %v517 = vsel %vm352, %v411, %v516
        %v518 = vsel %vm352, %v458, %v507
        %v519 = vrot.slane %v507, 4
        %v520 = vsel %vm352, %v419, %v519
        %v521 = vsel %vm352, %v462, %v511
        %v522 = vrot.slane %v511, 4
        %v523 = vsel %vm352, %v423, %v522
        %v524 = vsel %vm352, 0.0, %v448
        %v525 = vsel %vm352, 0.0, %v452
        %v526 = vsel %vm352, 0.0, %v456
        %v527 = vsel %vm352, 0.0, %v460
        %v529 = vsel %vm245, %v449, 0
        %v532 = vsel %vm245, %v512, 0
        %v535 = vsel %vm245, %v431, 0
        %537 = vmatpush.xpose.msra.mxu0 0.0
        %538 = vmatpush.xpose.msra.mxu0 0.0
        %539 = vmatpush.xpose.msra.mxu0 0.0
        %540 = vmatpush.xpose.msra.mxu0 0.0
        %541 = vmatpush.xpose.msra.mxu0 0.0
        %542 = vmatpush.xpose.msra.mxu0 0.0
        %543 = vmatpush.xpose.msra.mxu0 0.0
        %544 = vmatpush.xpose.msra.mxu0 0.0
        %545 = vmatpush.xpose.msra.mxu0 0.0
        %546 = vmatpush.xpose.msra.mxu0 0.0
        %547 = vmatpush.xpose.msra.mxu0 0.0
        %548 = vmatpush.xpose.msra.mxu0 0.0
        %549 = vmatpush.xpose.msra.mxu0 0.0
        %550 = vmatpush.xpose.msra.mxu0 0.0
        %551 = vmatpush.xpose.msra.mxu0 %v535
        %552 = vmatpush.xpose.msra.mxu0 %v532
        %553 = vmatmul.f32.gmra.mxu0 %v529
        %v554 = vpop.f32.mrf.mxu0
        %v555 = vadd.f32 0.0, %v554
        %556 = vdwg.mxu0
        %v558 = vsel %vm245, %v451, 0
        %v561 = vsel %vm245, %v514, 0
        %v564 = vsel %vm245, %v524, 0
        %566 = vmatpush.xpose.msra.mxu0 0.0
        %567 = vmatpush.xpose.msra.mxu0 0.0
        %568 = vmatpush.xpose.msra.mxu0 0.0
        %569 = vmatpush.xpose.msra.mxu0 0.0
        %570 = vmatpush.xpose.msra.mxu0 0.0
        %571 = vmatpush.xpose.msra.mxu0 0.0
        %572 = vmatpush.xpose.msra.mxu0 0.0
        %573 = vmatpush.xpose.msra.mxu0 0.0
        %574 = vmatpush.xpose.msra.mxu0 0.0
        %575 = vmatpush.xpose.msra.mxu0 0.0
        %576 = vmatpush.xpose.msra.mxu0 0.0
        %577 = vmatpush.xpose.msra.mxu0 0.0
        %578 = vmatpush.xpose.msra.mxu0 0.0
        %579 = vmatpush.xpose.msra.mxu0 0.0
        %580 = vmatpush.xpose.msra.mxu0 %v564
        %581 = vmatpush.xpose.msra.mxu0 %v561
        %582 = vmatmul.f32.gmra.mxu0 %v558
        %v583 = vpop.f32.mrf.mxu0
        %v584 = vadd.f32 0.0, %v583
        %585 = vdwg.mxu0
        %v587 = vsel %vm245, %v453, 0
        %v590 = vsel %vm245, %v515, 0
        %v593 = vsel %vm245, %v435, 0
        %595 = vmatpush.xpose.msra.mxu0 0.0
        %596 = vmatpush.xpose.msra.mxu0 0.0
        %597 = vmatpush.xpose.msra.mxu0 0.0
        %598 = vmatpush.xpose.msra.mxu0 0.0
        %599 = vmatpush.xpose.msra.mxu0 0.0
        %600 = vmatpush.xpose.msra.mxu0 0.0
        %601 = vmatpush.xpose.msra.mxu0 0.0
        %602 = vmatpush.xpose.msra.mxu0 0.0
        %603 = vmatpush.xpose.msra.mxu0 0.0
        %604 = vmatpush.xpose.msra.mxu0 0.0
        %605 = vmatpush.xpose.msra.mxu0 0.0
        %606 = vmatpush.xpose.msra.mxu0 0.0
        %607 = vmatpush.xpose.msra.mxu0 0.0
        %608 = vmatpush.xpose.msra.mxu0 0.0
        %609 = vmatpush.xpose.msra.mxu0 %v593
        %610 = vmatpush.xpose.msra.mxu0 %v590
        %611 = vmatmul.f32.gmra.mxu0 %v587
        %v612 = vpop.f32.mrf.mxu0
        %v613 = vadd.f32 0.0, %v612
        %614 = vdwg.mxu0
        %v616 = vsel %vm245, %v455, 0
        %v619 = vsel %vm245, %v517, 0
        %v622 = vsel %vm245, %v525, 0
        %624 = vmatpush.xpose.msra.mxu0 0.0
        %625 = vmatpush.xpose.msra.mxu0 0.0
        %626 = vmatpush.xpose.msra.mxu0 0.0
        %627 = vmatpush.xpose.msra.mxu0 0.0
        %628 = vmatpush.xpose.msra.mxu0 0.0
        %629 = vmatpush.xpose.msra.mxu0 0.0
        %630 = vmatpush.xpose.msra.mxu0 0.0
        %631 = vmatpush.xpose.msra.mxu0 0.0
        %632 = vmatpush.xpose.msra.mxu0 0.0
        %633 = vmatpush.xpose.msra.mxu0 0.0
        %634 = vmatpush.xpose.msra.mxu0 0.0
        %635 = vmatpush.xpose.msra.mxu0 0.0
        %636 = vmatpush.xpose.msra.mxu0 0.0
        %637 = vmatpush.xpose.msra.mxu0 0.0
        %638 = vmatpush.xpose.msra.mxu0 %v622
        %639 = vmatpush.xpose.msra.mxu0 %v619
        %640 = vmatmul.f32.gmra.mxu0 %v616
        %v641 = vpop.f32.mrf.mxu0
        %v642 = vadd.f32 0.0, %v641
        %643 = vdwg.mxu0
        %v645 = vsel %vm245, %v457, 0
        %v648 = vsel %vm245, %v518, 0
        %v651 = vsel %vm245, %v443, 0
        %653 = vmatpush.xpose.msra.mxu0 0.0
        %654 = vmatpush.xpose.msra.mxu0 0.0
        %655 = vmatpush.xpose.msra.mxu0 0.0
        %656 = vmatpush.xpose.msra.mxu0 0.0
        %657 = vmatpush.xpose.msra.mxu0 0.0
        %658 = vmatpush.xpose.msra.mxu0 0.0
        %659 = vmatpush.xpose.msra.mxu0 0.0
        %660 = vmatpush.xpose.msra.mxu0 0.0
        %661 = vmatpush.xpose.msra.mxu0 0.0
        %662 = vmatpush.xpose.msra.mxu0 0.0
        %663 = vmatpush.xpose.msra.mxu0 0.0
        %664 = vmatpush.xpose.msra.mxu0 0.0
        %665 = vmatpush.xpose.msra.mxu0 0.0
        %666 = vmatpush.xpose.msra.mxu0 0.0
        %667 = vmatpush.xpose.msra.mxu0 %v651
        %668 = vmatpush.xpose.msra.mxu0 %v648
        %669 = vmatmul.f32.gmra.mxu0 %v645
        %v670 = vpop.f32.mrf.mxu0
        %v671 = vadd.f32 0.0, %v670
        %672 = vdwg.mxu0
        %v674 = vsel %vm245, %v459, 0
        %v677 = vsel %vm245, %v520, 0
        %v680 = vsel %vm245, %v526, 0
        %682 = vmatpush.xpose.msra.mxu0 0.0
        %683 = vmatpush.xpose.msra.mxu0 0.0
        %684 = vmatpush.xpose.msra.mxu0 0.0
        %685 = vmatpush.xpose.msra.mxu0 0.0
        %686 = vmatpush.xpose.msra.mxu0 0.0
        %687 = vmatpush.xpose.msra.mxu0 0.0
        %688 = vmatpush.xpose.msra.mxu0 0.0
        %689 = vmatpush.xpose.msra.mxu0 0.0
        %690 = vmatpush.xpose.msra.mxu0 0.0
        %691 = vmatpush.xpose.msra.mxu0 0.0
        %692 = vmatpush.xpose.msra.mxu0 0.0
        %693 = vmatpush.xpose.msra.mxu0 0.0
        %694 = vmatpush.xpose.msra.mxu0 0.0
        %695 = vmatpush.xpose.msra.mxu0 0.0
        %696 = vmatpush.xpose.msra.mxu0 %v680
        %697 = vmatpush.xpose.msra.mxu0 %v677
        %698 = vmatmul.f32.gmra.mxu0 %v674
        %v699 = vpop.f32.mrf.mxu0
        %v700 = vadd.f32 0.0, %v699
        %701 = vdwg.mxu0
        %v703 = vsel %vm245, %v461, 0
        %v706 = vsel %vm245, %v521, 0
        %v709 = vsel %vm245, %v447, 0
        %711 = vmatpush.xpose.msra.mxu0 0.0
        %712 = vmatpush.xpose.msra.mxu0 0.0
        %713 = vmatpush.xpose.msra.mxu0 0.0
        %714 = vmatpush.xpose.msra.mxu0 0.0
        %715 = vmatpush.xpose.msra.mxu0 0.0
        %716 = vmatpush.xpose.msra.mxu0 0.0
        %717 = vmatpush.xpose.msra.mxu0 0.0
        %718 = vmatpush.xpose.msra.mxu0 0.0
        %719 = vmatpush.xpose.msra.mxu0 0.0
        %720 = vmatpush.xpose.msra.mxu0 0.0
        %721 = vmatpush.xpose.msra.mxu0 0.0
        %722 = vmatpush.xpose.msra.mxu0 0.0
        %723 = vmatpush.xpose.msra.mxu0 0.0
        %724 = vmatpush.xpose.msra.mxu0 0.0
        %725 = vmatpush.xpose.msra.mxu0 %v709
        %726 = vmatpush.xpose.msra.mxu0 %v706
        %727 = vmatmul.f32.gmra.mxu0 %v703
        %v728 = vpop.f32.mrf.mxu0
        %v729 = vadd.f32 0.0, %v728
        %730 = vdwg.mxu0
        %v732 = vsel %vm245, %v463, 0
        %v735 = vsel %vm245, %v523, 0
        %v738 = vsel %vm245, %v527, 0
        %740 = vmatpush.xpose.msra.mxu0 0.0
        %741 = vmatpush.xpose.msra.mxu0 0.0
        %742 = vmatpush.xpose.msra.mxu0 0.0
        %743 = vmatpush.xpose.msra.mxu0 0.0
        %744 = vmatpush.xpose.msra.mxu0 0.0
        %745 = vmatpush.xpose.msra.mxu0 0.0
        %746 = vmatpush.xpose.msra.mxu0 0.0
        %747 = vmatpush.xpose.msra.mxu0 0.0
        %748 = vmatpush.xpose.msra.mxu0 0.0
        %749 = vmatpush.xpose.msra.mxu0 0.0
        %750 = vmatpush.xpose.msra.mxu0 0.0
        %751 = vmatpush.xpose.msra.mxu0 0.0
        %752 = vmatpush.xpose.msra.mxu0 0.0
        %753 = vmatpush.xpose.msra.mxu0 0.0
        %754 = vmatpush.xpose.msra.mxu0 %v738
        %755 = vmatpush.xpose.msra.mxu0 %v735
        %756 = vmatmul.f32.gmra.mxu0 %v732
        %v757 = vpop.f32.mrf.mxu0
        %v758 = vadd.f32 0.0, %v757
        %759 = vdwg.mxu0
        %vm760 = vcmask 97280
        %761 = vst.msk [vmem:[%s206] sm:$0xff] %vm760, %v555
        %762 = vst.msk [vmem:[%s206 + $0x8] sm:$0xff] %vm760, %v584
        %763 = vst.msk [vmem:[%s206 + $0x10] sm:$0xff] %vm760, %v613
        %764 = vst.msk [vmem:[%s206 + $0x18] sm:$0xff] %vm760, %v642
        %765 = vst.msk [vmem:[%s206 + $0x20] sm:$0xff] %vm760, %v671
        %766 = vst.msk [vmem:[%s206 + $0x28] sm:$0xff] %vm760, %v700
        %767 = vst.msk [vmem:[%s206 + $0x30] sm:$0xff] %vm760, %v729
        %768 = vst.msk [vmem:[%s206 + $0x38] sm:$0xff] %vm760, %v758
        %s769 = sand.u32 %s100, 1
        %s770 = scalar_lea.sflag [#allocation3], %s769
        %s771 = sand.u32 %s100, 1
        %s772 = smul.addr %s771, 64
        %s773 = scalar_lea.vmem [#allocation2], %s772
        %p774 = scmp.lt.s32.totalorder %s19, 31
        %s775 = scalar_select %p774, %s19, 31
        %s776 = smul.addr %s775, 384
        %s777 = smul.addr %s776, 8
        %s778 = scalar_lea.vmem %s4, %s777
        // Predicated region
        $region33: #{model_forward.1} parent=31 // pred_check
          %p779 = pneg %p110
        $region34: #{model_forward.1} parent=31 // pred_check_branch
          %781 = sbr.rel (%p779) target = $region36
        $region35: #{model_forward.1} parent=31 // pred_region
          %783 = vsyncadd %s770, 0
          %s784 = smul.addr %s19, 8
          %s785 = smul.addr %s784, 8
          %s786 = scalar_lea.hbm %s3, %s785
          %s787 = sshll.u32 %s773, 4
          %s788 = int_to_ptr.vmem [resolvable:$true] %s787
          %s789 = sshll.u32 %s786, 4
          %s790 = int_to_ptr.hbm [resolvable:$true] %s789
          %795 = dma.vmem_to_hbm [thread:$0]  %s788, 1024, %s790, %s770, 128, 128, 8
        $region36: #{model_forward.1} parent=31 // pred_fallthru
          _
        // Predicated region
        $region37: #{model_forward.1} parent=31 // pred_check
          %p796 = pneg %p136
        $region38: #{model_forward.1} parent=31 // pred_check_branch
          %798 = sbr.rel (%p796) target = $region40
        $region39: #{model_forward.1} parent=31 // pred_region
          _
        $region40: #{model_forward.1} parent=31 // pred_fallthru
          _
      $region32: #{model_forward.1} parent=5 // pred_fallthru
        _
      %p799 = scmp.le.s32.totalorder 2, %s14
      // Predicated region
      $region41: #{model_forward.1} parent=5 // pred_check
        %p800 = pneg %p799
      $region42: #{model_forward.1} parent=5 // pred_check_branch
        %802 = sbr.rel (%p800) target = $region44
      $region43: #{model_forward.1} parent=5 // pred_region
        %s803 = ssub.s32 %s14, 2
        // Predicated region
        $region45: #{model_forward.1} parent=43 // pred_check
          %p804 = pneg %p116
        $region46: #{model_forward.1} parent=43 // pred_check_branch
          %806 = sbr.rel (%p804) target = $region48
        $region47: #{model_forward.1} parent=43 // pred_region
          %s807 = sand.u32 %s101, 1
          %s808 = scalar_lea.sflag [#allocation3], %s807
          %s809 = sand.u32 %s101, 1
          %s810 = smul.addr %s809, 64
          %s811 = scalar_lea.vmem [#allocation2], %s810
          %813 = dma.done %s808, 1024
        $region48: #{model_forward.1} parent=43 // pred_fallthru
          _
        // Predicated region
        $region49: #{model_forward.1} parent=43 // pred_check
          %p814 = pneg %p142
        $region50: #{model_forward.1} parent=43 // pred_check_branch
          %816 = sbr.rel (%p814) target = $region52
        $region51: #{model_forward.1} parent=43 // pred_region
          %p817 = scmp.lt.s32.totalorder %s20, 31
          %s818 = scalar_select %p817, %s20, 31
          %s819 = smul.addr %s818, 384
          %s820 = smul.addr %s819, 8
          %s821 = scalar_lea.vmem %s4, %s820
        $region52: #{model_forward.1} parent=43 // pred_fallthru
          _
      $region44: #{model_forward.1} parent=5 // pred_fallthru
        _
    $region6: #{model_forward.1} parent=1 // loop_footer
      %s18 = sadd.s32 1, %s14
    $region7: #{model_forward.1} parent=1 // loop_footer_branch
      %13 = sbr.rel target = $region3
    $region8: #{model_forward.1} parent=1 // loop_exit
      _
    %822 = vsyncpa [#allocation3], 1
    %s823 = scalar_lea.sflag [#allocation3], 1
    %824 = vsyncpa %s823, 1

</llo_original>
